<compile_context>
chip_gen: v6e
topology: v6e:2x2x1
jax: 0.10.0
libtpu: 0.0.40
codegen_flags: <defaults>
</compile_context>

<pallas_src>
import jax
import jax.numpy as jnp
import numpy as np
from jax.experimental import pallas as pl
from jax.experimental.pallas import tpu as pltpu

EPS = 1e-5


def _round_up8(v):
    return -(-v // 8) * 8


def _param_offsets(c9, p):
    """Static sublane offsets into the merged parameter array."""
    off_w2 = _round_up8(c9)            # start of w2 center tap (P rows)
    off_bn = _round_up8(off_w2 + p)    # start of [gamma1, beta1, gamma2, beta2]
    total = _round_up8(off_bn + 4)
    return off_w2, off_bn, total


def _basic_block_kernel(x_ref, prm_ref, bmat_ref, o_ref):
    x = x_ref[...]                                             # (N, C*9)
    n = x.shape[0]
    c9 = x.shape[1]
    p = prm_ref.shape[1]
    inv_n = 1.0 / n

    # Static, 8-aligned slices of the merged parameter array (free views).
    off_w2, off_bn, _ = _param_offsets(c9, p)
    w1 = prm_ref[0:c9, :]                                      # (C*9, P)
    w2 = prm_ref[off_w2:off_w2 + p, :]                         # (P, P)
    gamma1 = prm_ref[off_bn + 0:off_bn + 1, :]                 # (1, P)
    beta1 = prm_ref[off_bn + 1:off_bn + 2, :]
    gamma2 = prm_ref[off_bn + 2:off_bn + 3, :]
    beta2 = prm_ref[off_bn + 3:off_bn + 4, :]

    # conv1 (3x3, no padding, on a 3x3 input) == matmul over C*9
    h1 = jnp.dot(x, w1, preferred_element_type=jnp.float32)    # (N, P)

    # bn1 (training mode, spatial = 1x1): fused one-pass moments (f32)
    mu1 = jnp.sum(h1, axis=0, keepdims=True) * inv_n
    var1 = jnp.maximum(
        jnp.sum(h1 * h1, axis=0, keepdims=True) * inv_n - mu1 * mu1, 0.0)
    y1 = (h1 - mu1) * jax.lax.rsqrt(var1 + EPS) * gamma1 + beta1
    y1 = jnp.maximum(y1, 0.0)                                  # relu

    # conv2 (3x3, padding=1) on a 1x1 map: only the center tap contributes
    h2 = jnp.dot(y1, w2, preferred_element_type=jnp.float32)   # (N, P)

    # bn2 (training mode): fused one-pass moments (f32)
    mu2 = jnp.sum(h2, axis=0, keepdims=True) * inv_n
    var2 = jnp.maximum(
        jnp.sum(h2 * h2, axis=0, keepdims=True) * inv_n - mu2 * mu2, 0.0)
    y2 = (h2 - mu2) * jax.lax.rsqrt(var2 + EPS) * gamma2 + beta2
    y2 = jnp.maximum(y2, 0.0)                                  # relu      (N, P)

    # Residual add, lane-dense: broadcast y2 (N,P) -> (N, P*9) on the MXU via
    # the precomputed selection matrix (constant input; no per-call iota work).
    y2b = jnp.dot(y2, bmat_ref[...], preferred_element_type=jnp.float32)

    o_ref[...] = jnp.maximum(y2b + x, 0.0)                     # + residual, relu


def prepare_params(w1, w2, g1, b1, g2, b2):
    """One-time parameter re-layout (kept out of the per-call jit path).

    Returns:
      prm:  (rows, P) f32 — sublane-concatenated [w1 (C*9,P); w2 center (P,P);
            gamma1; beta1; gamma2; beta2; zero pad], all slices 8-aligned.
      bmat: (P, P*9) f32 — selection matrix bmat[c, c*9 + k] = 1 used to
            broadcast the 1x1 conv output against the 3x3 residual on the MXU.
    """
    p, c = w1.shape[0], w1.shape[1]
    c9 = c * 9
    hw = 9
    off_w2, off_bn, total = _param_offsets(c9, p)

    w1f = w1.reshape(p, c9).T.astype(jnp.float32)              # (C*9, P)
    w2c = w2[:, :, 1, 1].T.astype(jnp.float32)                 # (P, P) center tap
    bn = jnp.stack([g1, b1, g2, b2], axis=0).astype(jnp.float32)   # (4, P)

    prm = jnp.zeros((total, p), jnp.float32)
    prm = prm.at[0:c9, :].set(w1f)
    prm = prm.at[off_w2:off_w2 + p, :].set(w2c)
    prm = prm.at[off_bn:off_bn + 4, :].set(bn)

    col = jax.lax.broadcasted_iota(jnp.int32, (p, p * hw), 1)
    row = jax.lax.broadcasted_iota(jnp.int32, (p, p * hw), 0)
    bmat = ((col >= row * hw) & (col < (row + 1) * hw)).astype(jnp.float32)
    return prm, bmat


@jax.jit
def basic_block_forward(x, prm, bmat):
    n, c, h, w = x.shape
    p = prm.shape[1]
    # module is only shape-consistent (downsample=None) for 3x3 spatial, C == P
    assert (h, w) == (3, 3) and c == p

    x_flat = x.reshape(n, c * h * w)              # free view of contiguous NCHW

    vmem = pl.BlockSpec(memory_space=pltpu.MemorySpace.VMEM)
    out_flat = pl.pallas_call(
        _basic_block_kernel,
        out_shape=jax.ShapeDtypeStruct((n, p * h * w), jnp.float32),
        in_specs=[vmem, vmem, vmem],
        out_specs=vmem,
        input_output_aliases={0: 0},              # x fully in VMEM before writeback
    )(x_flat, prm, bmat)
    return out_flat.reshape(n, p, h, w)


# ---------------- pure-JAX reference (mirrors the PyTorch forward) -----------
def _conv2d(x, w, padding, dilation):
    return jax.lax.conv_general_dilated(
        x, w, window_strides=(1, 1),
        padding=[(padding, padding), (padding, padding)],
        rhs_dilation=(dilation, dilation),
        dimension_numbers=("NCHW", "OIHW", "NCHW"))


def _bn_train(x, g, b):
    mu = x.mean(axis=(0, 2, 3), keepdims=True)
    var = ((x - mu) ** 2).mean(axis=(0, 2, 3), keepdims=True)
    return (x - mu) * jax.lax.rsqrt(var + EPS) * g[None, :, None, None] \
        + b[None, :, None, None]


def ref_forward(x, w1, w2, g1, b1, g2, b2):
    out = _conv2d(x, w1, padding=0, dilation=1)            # conv1
    out = jnp.maximum(_bn_train(out, g1, b1), 0.0)         # bn1 + relu
    out = _conv2d(out, w2, padding=1, dilation=1)          # conv2
    out = jnp.maximum(_bn_train(out, g2, b2), 0.0)         # bn2 + relu
    out = out + x                                          # residual (broadcast)
    return jnp.maximum(out, 0.0)                           # relu_inplace


if __name__ == "__main__":
    key = jax.random.PRNGKey(0)
    k_x, k_w1, k_w2, k_g1, k_b1, k_g2, k_b2 = jax.random.split(key, 7)

    N, C, H, W = 8, 32, 3, 3      # inplanes == planes required (downsample=None)
    P = C

    x = jax.random.normal(k_x, (N, C, H, W), dtype=jnp.float32)
    w1 = jax.random.normal(k_w1, (P, C, 3, 3), dtype=jnp.float32) * 0.1
    w2 = jax.random.normal(k_w2, (P, P, 3, 3), dtype=jnp.float32) * 0.1
    g1 = 1.0 + 0.1 * jax.random.normal(k_g1, (P,), dtype=jnp.float32)
    b1 = 0.1 * jax.random.normal(k_b1, (P,), dtype=jnp.float32)
    g2 = 1.0 + 0.1 * jax.random.normal(k_g2, (P,), dtype=jnp.float32)
    b2 = 0.1 * jax.random.normal(k_b2, (P,), dtype=jnp.float32)

    # One-time parameter setup (outside the per-call path).
    prm, bmat = prepare_params(w1, w2, g1, b1, g2, b2)
    prm, bmat = jax.block_until_ready((prm, bmat))

    # Reference computed first (x is not mutated by the kernel path).
    ref = jax.block_until_ready(ref_forward(x, w1, w2, g1, b1, g2, b2))

    out = basic_block_forward(x, prm, bmat)
    out = jax.block_until_ready(out)

    np.testing.assert_allclose(np.asarray(out), np.asarray(ref),
                               rtol=1e-4, atol=1e-4)
    print("KERNEL_OK")
</pallas_src>

<mosaic_0001>
module attributes {stable_mosaic.version = 11 : i64} {
  func.func @_basic_block_kernel(%arg0: memref<8x288xf32, #tpu.memory_space<vmem>>, %arg1: memref<328x32xf32, #tpu.memory_space<vmem>>, %arg2: memref<32x288xf32, #tpu.memory_space<vmem>>, %arg3: memref<8x288xf32, #tpu.memory_space<vmem>>) attributes {dimension_semantics = [], scalar_prefetch = 0 : i64, scratch_operands = 0 : i64, tpu.core_type = #tpu.core_type<tc>} {
    %c0 = arith.constant 0 : index
    %c0_0 = arith.constant 0 : index
    %0 = vector.load %arg0[%c0, %c0_0] : memref<8x288xf32, #tpu.memory_space<vmem>>, vector<8x288xf32>
    %c0_1 = arith.constant 0 : index
    %c0_2 = arith.constant 0 : index
    %1 = vector.load %arg1[%c0_1, %c0_2] : memref<328x32xf32, #tpu.memory_space<vmem>>, vector<288x32xf32>
    %c288 = arith.constant 288 : index
    %c0_3 = arith.constant 0 : index
    %2 = vector.load %arg1[%c288, %c0_3] : memref<328x32xf32, #tpu.memory_space<vmem>>, vector<32x32xf32>
    %c320 = arith.constant 320 : index
    %c0_4 = arith.constant 0 : index
    %3 = vector.load %arg1[%c320, %c0_4] : memref<328x32xf32, #tpu.memory_space<vmem>>, vector<1x32xf32>
    %c321 = arith.constant 321 : index
    %c0_5 = arith.constant 0 : index
    %4 = vector.load %arg1[%c321, %c0_5] : memref<328x32xf32, #tpu.memory_space<vmem>>, vector<1x32xf32>
    %c322 = arith.constant 322 : index
    %c0_6 = arith.constant 0 : index
    %5 = vector.load %arg1[%c322, %c0_6] : memref<328x32xf32, #tpu.memory_space<vmem>>, vector<1x32xf32>
    %c323 = arith.constant 323 : index
    %c0_7 = arith.constant 0 : index
    %6 = vector.load %arg1[%c323, %c0_7] : memref<328x32xf32, #tpu.memory_space<vmem>>, vector<1x32xf32>
    %cst = arith.constant dense<0.000000e+00> : vector<8x32xf32>
    %7 = tpu.matmul %0, %1, %cst {dimension_numbers = #tpu.dot_dimension_numbers<[1], [0], [0], [1], [0, 0, 1, 1], [], []>} : vector<8x288xf32>, vector<288x32xf32>, vector<8x32xf32> -> vector<8x32xf32>
    %cst_8 = arith.constant dense<0.000000e+00> : vector<32xf32>
    %8 = vector.multi_reduction <add>, %7, %cst_8 [0] : vector<8x32xf32> to vector<32xf32>
    %9 = vector.shape_cast %8 : vector<32xf32> to vector<1x32xf32>
    %cst_9 = arith.constant 1.250000e-01 : f32
    %10 = vector.broadcast %cst_9 : f32 to vector<1x32xf32>
    %11 = arith.mulf %9, %10 : vector<1x32xf32>
    %12 = arith.mulf %7, %7 : vector<8x32xf32>
    %cst_10 = arith.constant dense<0.000000e+00> : vector<32xf32>
    %13 = vector.multi_reduction <add>, %12, %cst_10 [0] : vector<8x32xf32> to vector<32xf32>
    %14 = vector.shape_cast %13 : vector<32xf32> to vector<1x32xf32>
    %cst_11 = arith.constant 1.250000e-01 : f32
    %15 = vector.broadcast %cst_11 : f32 to vector<1x32xf32>
    %16 = arith.mulf %14, %15 : vector<1x32xf32>
    %17 = arith.mulf %11, %11 : vector<1x32xf32>
    %18 = arith.subf %16, %17 : vector<1x32xf32>
    %cst_12 = arith.constant 0.000000e+00 : f32
    %19 = vector.broadcast %cst_12 : f32 to vector<1x32xf32>
    %20 = arith.maximumf %18, %19 : vector<1x32xf32>
    %21 = vector.broadcast %11 : vector<1x32xf32> to vector<8x32xf32>
    %22 = arith.subf %7, %21 : vector<8x32xf32>
    %cst_13 = arith.constant 9.99999974E-6 : f32
    %23 = vector.broadcast %cst_13 : f32 to vector<1x32xf32>
    %24 = arith.addf %20, %23 : vector<1x32xf32>
    %25 = math.rsqrt %24 : vector<1x32xf32>
    %26 = vector.broadcast %25 : vector<1x32xf32> to vector<8x32xf32>
    %27 = arith.mulf %22, %26 : vector<8x32xf32>
    %28 = vector.broadcast %3 : vector<1x32xf32> to vector<8x32xf32>
    %29 = arith.mulf %27, %28 : vector<8x32xf32>
    %30 = vector.broadcast %4 : vector<1x32xf32> to vector<8x32xf32>
    %31 = arith.addf %29, %30 : vector<8x32xf32>
    %cst_14 = arith.constant 0.000000e+00 : f32
    %32 = vector.broadcast %cst_14 : f32 to vector<8x32xf32>
    %33 = arith.maximumf %31, %32 : vector<8x32xf32>
    %cst_15 = arith.constant dense<0.000000e+00> : vector<8x32xf32>
    %34 = tpu.matmul %33, %2, %cst_15 {dimension_numbers = #tpu.dot_dimension_numbers<[1], [0], [0], [1], [0, 0, 1, 1], [], []>} : vector<8x32xf32>, vector<32x32xf32>, vector<8x32xf32> -> vector<8x32xf32>
    %cst_16 = arith.constant dense<0.000000e+00> : vector<32xf32>
    %35 = vector.multi_reduction <add>, %34, %cst_16 [0] : vector<8x32xf32> to vector<32xf32>
    %36 = vector.shape_cast %35 : vector<32xf32> to vector<1x32xf32>
    %cst_17 = arith.constant 1.250000e-01 : f32
    %37 = vector.broadcast %cst_17 : f32 to vector<1x32xf32>
    %38 = arith.mulf %36, %37 : vector<1x32xf32>
    %39 = arith.mulf %34, %34 : vector<8x32xf32>
    %cst_18 = arith.constant dense<0.000000e+00> : vector<32xf32>
    %40 = vector.multi_reduction <add>, %39, %cst_18 [0] : vector<8x32xf32> to vector<32xf32>
    %41 = vector.shape_cast %40 : vector<32xf32> to vector<1x32xf32>
    %cst_19 = arith.constant 1.250000e-01 : f32
    %42 = vector.broadcast %cst_19 : f32 to vector<1x32xf32>
    %43 = arith.mulf %41, %42 : vector<1x32xf32>
    %44 = arith.mulf %38, %38 : vector<1x32xf32>
    %45 = arith.subf %43, %44 : vector<1x32xf32>
    %cst_20 = arith.constant 0.000000e+00 : f32
    %46 = vector.broadcast %cst_20 : f32 to vector<1x32xf32>
    %47 = arith.maximumf %45, %46 : vector<1x32xf32>
    %48 = vector.broadcast %38 : vector<1x32xf32> to vector<8x32xf32>
    %49 = arith.subf %34, %48 : vector<8x32xf32>
    %cst_21 = arith.constant 9.99999974E-6 : f32
    %50 = vector.broadcast %cst_21 : f32 to vector<1x32xf32>
    %51 = arith.addf %47, %50 : vector<1x32xf32>
    %52 = math.rsqrt %51 : vector<1x32xf32>
    %53 = vector.broadcast %52 : vector<1x32xf32> to vector<8x32xf32>
    %54 = arith.mulf %49, %53 : vector<8x32xf32>
    %55 = vector.broadcast %5 : vector<1x32xf32> to vector<8x32xf32>
    %56 = arith.mulf %54, %55 : vector<8x32xf32>
    %57 = vector.broadcast %6 : vector<1x32xf32> to vector<8x32xf32>
    %58 = arith.addf %56, %57 : vector<8x32xf32>
    %cst_22 = arith.constant 0.000000e+00 : f32
    %59 = vector.broadcast %cst_22 : f32 to vector<8x32xf32>
    %60 = arith.maximumf %58, %59 : vector<8x32xf32>
    %c0_23 = arith.constant 0 : index
    %c0_24 = arith.constant 0 : index
    %61 = vector.load %arg2[%c0_23, %c0_24] : memref<32x288xf32, #tpu.memory_space<vmem>>, vector<32x288xf32>
    %cst_25 = arith.constant dense<0.000000e+00> : vector<8x288xf32>
    %62 = tpu.matmul %60, %61, %cst_25 {dimension_numbers = #tpu.dot_dimension_numbers<[1], [0], [0], [1], [0, 0, 1, 1], [], []>} : vector<8x32xf32>, vector<32x288xf32>, vector<8x288xf32> -> vector<8x288xf32>
    %63 = arith.addf %62, %0 : vector<8x288xf32>
    %cst_26 = arith.constant 0.000000e+00 : f32
    %64 = vector.broadcast %cst_26 : f32 to vector<8x288xf32>
    %65 = arith.maximumf %63, %64 : vector<8x288xf32>
    %c0_27 = arith.constant 0 : index
    %c0_28 = arith.constant 0 : index
    %66 = vector.load %arg3[%c0_27, %c0_28] : memref<8x288xf32, #tpu.memory_space<vmem>>, vector<8x288xf32>
    tpu.vector_store %arg3[%c0_27, %c0_28], %65 {strides = array<i32>} : memref<8x288xf32, #tpu.memory_space<vmem>>, vector<8x288xf32>,
    return
  }
}

</mosaic_0001>

<llo_original>
// kernel: basic_block_forward.1
$region0: #{basic_block_forward.1}
  #allocation0 [shape = 'u32[]', space=smem, size = 0x4, offset = 0x4, fixed_abs, tag = 'smem constant byte address 0x4 - core index']
  #allocation1 [shape = 'u32[144,128]{1,0:T(1,128)}', space=vmem, size = 0x12000, scoped, tag = 'internal scratch']
  %s0 = inlined_call_operand.vmem [shape: f32[8,288], index: 0, kind: input, shape index: {}, may-alias: {0,3}]
  %s1 = inlined_call_operand.vmem [shape: f32[328,32], index: 1, kind: input, shape index: {}]
  %s2 = inlined_call_operand.vmem [shape: f32[32,288], index: 2, kind: input, shape index: {}]
  %s3 = inlined_call_operand.vmem [shape: f32[8,288], index: 3, kind: output, shape index: {}, may-alias: {0,3}]
  %s4 = sld [smem:[#allocation0]]
  $region22: #{basic_block_forward.1} parent=0
    _
  %s6 = ssub.s32 1, %s4
  %s7 = scalar_select 0, %s6, %s4
  // Predicated region
  $region2: #{basic_block_forward.1} parent=0 // pred_check
    _
  $region3: #{basic_block_forward.1} parent=0 // pred_check_branch
    %9 = sbr.rel (0) target = $region5
  $region4: #{basic_block_forward.1} parent=0 // pred_region
    _
  $region5: #{basic_block_forward.1} parent=0 // pred_fallthru
    _
  // Predicated region
  $region6: #{basic_block_forward.1} parent=0 // pred_check
    _
  $region7: #{basic_block_forward.1} parent=0 // pred_check_branch
    %11 = sbr.rel (0) target = $region9
  $region8: #{basic_block_forward.1} parent=0 // pred_region
    _
  $region9: #{basic_block_forward.1} parent=0 // pred_fallthru
    _
  // Predicated region
  $region10: #{basic_block_forward.1} parent=0 // pred_check
    _
  $region11: #{basic_block_forward.1} parent=0 // pred_check_branch
    %13 = sbr.rel (0) target = $region13
  $region12: #{basic_block_forward.1} parent=0 // pred_region
    _
  $region13: #{basic_block_forward.1} parent=0 // pred_fallthru
    _
  %v14 = vld [vmem:[%s0] sm:$0xff]
  %v15 = vld [vmem:[%s0 + $0x8] sm:$0xff]
  %v16 = vld [vmem:[%s0 + $0x10] sm:$0xff]
  %v17 = vld [vmem:[%s1] sm:$0xff]
  %v18 = vld [vmem:[%s1 + $0x8] sm:$0xff]
  %v19 = vld [vmem:[%s1 + $0x10] sm:$0xff]
  %v20 = vld [vmem:[%s1 + $0x18] sm:$0xff]
  %v21 = vld [vmem:[%s1 + $0x20] sm:$0xff]
  %v22 = vld [vmem:[%s1 + $0x28] sm:$0xff]
  %v23 = vld [vmem:[%s1 + $0x30] sm:$0xff]
  %v24 = vld [vmem:[%s1 + $0x38] sm:$0xff]
  %v25 = vld [vmem:[%s1 + $0x40] sm:$0xff]
  %v26 = vld [vmem:[%s1 + $0x48] sm:$0xff]
  %v27 = vld [vmem:[%s1 + $0x50] sm:$0xff]
  %v28 = vld [vmem:[%s1 + $0x58] sm:$0xff]
  %v29 = vld [vmem:[%s1 + $0x60] sm:$0xff]
  %v30 = vld [vmem:[%s1 + $0x68] sm:$0xff]
  %v31 = vld [vmem:[%s1 + $0x70] sm:$0xff]
  %v32 = vld [vmem:[%s1 + $0x78] sm:$0xff]
  %v33 = vld [vmem:[%s1 + $0x80] sm:$0xff]
  %v34 = vld [vmem:[%s1 + $0x88] sm:$0xff]
  %v35 = vld [vmem:[%s1 + $0x90] sm:$0xff]
  %v36 = vld [vmem:[%s1 + $0x98] sm:$0xff]
  %v37 = vld [vmem:[%s1 + $0xa0] sm:$0xff]
  %v38 = vld [vmem:[%s1 + $0xa8] sm:$0xff]
  %v39 = vld [vmem:[%s1 + $0xb0] sm:$0xff]
  %v40 = vld [vmem:[%s1 + $0xb8] sm:$0xff]
  %v41 = vld [vmem:[%s1 + $0xc0] sm:$0xff]
  %v42 = vld [vmem:[%s1 + $0xc8] sm:$0xff]
  %v43 = vld [vmem:[%s1 + $0xd0] sm:$0xff]
  %v44 = vld [vmem:[%s1 + $0xd8] sm:$0xff]
  %v45 = vld [vmem:[%s1 + $0xe0] sm:$0xff]
  %v46 = vld [vmem:[%s1 + $0xe8] sm:$0xff]
  %v47 = vld [vmem:[%s1 + $0xf0] sm:$0xff]
  %v48 = vld [vmem:[%s1 + $0xf8] sm:$0xff]
  %v49 = vld [vmem:[%s1 + $0x100] sm:$0xff]
  %v50 = vld [vmem:[%s1 + $0x108] sm:$0xff]
  %v51 = vld [vmem:[%s1 + $0x110] sm:$0xff]
  %v52 = vld [vmem:[%s1 + $0x118] sm:$0xff]
  %v53 = vld [vmem:[%s1 + $0x120] sm:$0xff]
  %v54 = vld [vmem:[%s1 + $0x128] sm:$0xff]
  %v55 = vld [vmem:[%s1 + $0x130] sm:$0xff]
  %v56 = vld [vmem:[%s1 + $0x138] sm:$0xff]
  %v57 = vld [vmem:[%s1 + $0x140] sm:$0x1]
  %v58 = vld [vmem:[%s1 + $0x141] sm:$0x1]
  %v59 = vld [vmem:[%s1 + $0x142] sm:$0x1]
  %v60 = vld [vmem:[%s1 + $0x143] sm:$0x1]
  %vm61 = vcmask 261120
  %v63 = vsel %vm61, %v16, 0
  %65 = vmatprep.subr.mxu0 0.0
  %66 = vmatpush1.msra.mxu0 %v32
  %67 = vmatprep.subr.mxu0 0.0
  %68 = vmatpush1.msra.mxu0 %v31
  %69 = vmatprep.subr.mxu0 0.0
  %70 = vmatpush1.msra.mxu0 %v30
  %71 = vmatprep.subr.mxu0 0.0
  %72 = vmatpush1.msra.mxu0 %v29
  %73 = vmatprep.subr.mxu0 0.0
  %74 = vmatpush1.msra.mxu0 %v28
  %75 = vmatprep.subr.mxu0 0.0
  %76 = vmatpush1.msra.mxu0 %v27
  %77 = vmatprep.subr.mxu0 0.0
  %78 = vmatpush1.msra.mxu0 %v26
  %79 = vmatprep.subr.mxu0 0.0
  %80 = vmatpush1.msra.mxu0 %v25
  %81 = vmatprep.subr.mxu0 0.0
  %82 = vmatpush1.msra.mxu0 %v24
  %83 = vmatprep.subr.mxu0 0.0
  %84 = vmatpush1.msra.mxu0 %v23
  %85 = vmatprep.subr.mxu0 0.0
  %86 = vmatpush1.msra.mxu0 %v22
  %87 = vmatprep.subr.mxu0 0.0
  %88 = vmatpush1.msra.mxu0 %v21
  %89 = vmatprep.subr.mxu0 0.0
  %90 = vmatpush1.msra.mxu0 %v20
  %91 = vmatprep.subr.mxu0 0.0
  %92 = vmatpush1.msra.mxu0 %v19
  %93 = vmatprep.subr.mxu0 0.0
  %94 = vmatpush1.msra.mxu0 %v18
  %95 = vmatprep.subr.mxu0 0.0
  %96 = vmatpush1.msra.mxu0 %v17
  %97 = vmatprep.subr.mxu0 0.0
  %98 = vmatpush2.msra.mxu0 %v48
  %99 = vmatprep.subr.mxu0 0.0
  %100 = vmatpush2.msra.mxu0 %v47
  %101 = vmatprep.subr.mxu0 0.0
  %102 = vmatpush2.msra.mxu0 %v46
  %103 = vmatprep.subr.mxu0 0.0
  %104 = vmatpush2.msra.mxu0 %v45
  %105 = vmatprep.subr.mxu0 0.0
  %106 = vmatpush2.msra.mxu0 %v44
  %107 = vmatprep.subr.mxu0 0.0
  %108 = vmatpush2.msra.mxu0 %v43
  %109 = vmatprep.subr.mxu0 0.0
  %110 = vmatpush2.msra.mxu0 %v42
  %111 = vmatprep.subr.mxu0 0.0
  %112 = vmatpush2.msra.mxu0 %v41
  %113 = vmatprep.subr.mxu0 0.0
  %114 = vmatpush2.msra.mxu0 %v40
  %115 = vmatprep.subr.mxu0 0.0
  %116 = vmatpush2.msra.mxu0 %v39
  %117 = vmatprep.subr.mxu0 0.0
  %118 = vmatpush2.msra.mxu0 %v38
  %119 = vmatprep.subr.mxu0 0.0
  %120 = vmatpush2.msra.mxu0 %v37
  %121 = vmatprep.subr.mxu0 0.0
  %122 = vmatpush2.msra.mxu0 %v36
  %123 = vmatprep.subr.mxu0 0.0
  %124 = vmatpush2.msra.mxu0 %v35
  %125 = vmatprep.subr.mxu0 0.0
  %126 = vmatpush2.msra.mxu0 %v34
  %127 = vmatprep.subr.mxu0 0.0
  %128 = vmatpush2.msra.mxu0 %v33
  %129 = vmatprep.mubr.f32.mxu0 %v15
  %130 = vmatmul.mubr.f32.gmra.mxu0 %v14
  %v131 = vpop.f32.mrf.mxu0
  %v132 = vadd.f32 0.0, %v131
  %v133 = vpop.f32.mrf.mxu0
  %134 = vdwg.mxu0
  %135 = vmatprep.subr.mxu0 0.0
  %136 = vmatpush1.msra.mxu0 0.0
  %137 = vmatprep.subr.mxu0 0.0
  %138 = vmatpush1.msra.mxu0 0.0
  %139 = vmatprep.subr.mxu0 0.0
  %140 = vmatpush1.msra.mxu0 0.0
  %141 = vmatprep.subr.mxu0 0.0
  %142 = vmatpush1.msra.mxu0 0.0
  %143 = vmatprep.subr.mxu0 0.0
  %144 = vmatpush1.msra.mxu0 0.0
  %145 = vmatprep.subr.mxu0 0.0
  %146 = vmatpush1.msra.mxu0 0.0
  %147 = vmatprep.subr.mxu0 0.0
  %148 = vmatpush1.msra.mxu0 0.0
  %149 = vmatprep.subr.mxu0 0.0
  %150 = vmatpush1.msra.mxu0 0.0
  %151 = vmatprep.subr.mxu0 0.0
  %152 = vmatpush1.msra.mxu0 0.0
  %153 = vmatprep.subr.mxu0 0.0
  %154 = vmatpush1.msra.mxu0 0.0
  %155 = vmatprep.subr.mxu0 0.0
  %156 = vmatpush1.msra.mxu0 0.0
  %157 = vmatprep.subr.mxu0 0.0
  %158 = vmatpush1.msra.mxu0 0.0
  %159 = vmatprep.subr.mxu0 0.0
  %160 = vmatpush1.msra.mxu0 %v52
  %161 = vmatprep.subr.mxu0 0.0
  %162 = vmatpush1.msra.mxu0 %v51
  %163 = vmatprep.subr.mxu0 0.0
  %164 = vmatpush1.msra.mxu0 %v50
  %165 = vmatprep.subr.mxu0 0.0
  %166 = vmatpush1.msra.mxu0 %v49
  %167 = vmatprep.subr.mxu0 0.0
  %168 = vmatpush2.msra.mxu0 0.0
  %169 = vmatprep.subr.mxu0 0.0
  %170 = vmatpush2.msra.mxu0 0.0
  %171 = vmatprep.subr.mxu0 0.0
  %172 = vmatpush2.msra.mxu0 0.0
  %173 = vmatprep.subr.mxu0 0.0
  %174 = vmatpush2.msra.mxu0 0.0
  %175 = vmatprep.subr.mxu0 0.0
  %176 = vmatpush2.msra.mxu0 0.0
  %177 = vmatprep.subr.mxu0 0.0
  %178 = vmatpush2.msra.mxu0 0.0
  %179 = vmatprep.subr.mxu0 0.0
  %180 = vmatpush2.msra.mxu0 0.0
  %181 = vmatprep.subr.mxu0 0.0
  %182 = vmatpush2.msra.mxu0 0.0
  %183 = vmatprep.subr.mxu0 0.0
  %184 = vmatpush2.msra.mxu0 0.0
  %185 = vmatprep.subr.mxu0 0.0
  %186 = vmatpush2.msra.mxu0 0.0
  %187 = vmatprep.subr.mxu0 0.0
  %188 = vmatpush2.msra.mxu0 0.0
  %189 = vmatprep.subr.mxu0 0.0
  %190 = vmatpush2.msra.mxu0 0.0
  %191 = vmatprep.subr.mxu0 0.0
  %192 = vmatpush2.msra.mxu0 0.0
  %193 = vmatprep.subr.mxu0 0.0
  %194 = vmatpush2.msra.mxu0 0.0
  %195 = vmatprep.subr.mxu0 0.0
  %196 = vmatpush2.msra.mxu0 0.0
  %197 = vmatprep.subr.mxu0 0.0
  %198 = vmatpush2.msra.mxu0 0.0
  %199 = vmatprep.mubr.f32.mxu0 0.0
  %200 = vmatmul.mubr.f32.gmra.mxu0 %v63
  %v201 = vpop.f32.mrf.mxu0
  %v202 = vadd.f32 %v132, %v201
  %v203 = vpop.f32.mrf.mxu0
  %204 = vdwg.mxu0
  %v205 = vsel %vm61, %v202, 0.0
  %v206 = vrot.slane %v205, 4
  %v207 = vadd.f32 %v205, %v206
  %v208 = vrot.slane %v207, 2
  %v209 = vadd.f32 %v207, %v208
  %v210 = vrot.slane %v209, 1
  %v211 = vadd.f32 %v209, %v210
  %v212 = vmul.f32 %v211, 0.125
  %v213 = vmul.f32 %v202, %v202
  %v214 = vsel %vm61, %v213, 0.0
  %v215 = vrot.slane %v214, 4
  %v216 = vadd.f32 %v214, %v215
  %v217 = vrot.slane %v216, 2
  %v218 = vadd.f32 %v216, %v217
  %v219 = vrot.slane %v218, 1
  %v220 = vadd.f32 %v218, %v219
  %v221 = vmul.f32 %v220, 0.125
  %v222 = vmul.f32 %v212, %v212
  %v223 = vsub.f32 %v221, %v222
  %v224 = vmax.f32 %v223, 0.0
  %v225 = vsub.f32 %v202, %v212
  %v226 = vadd.f32 %v224, 1e-05
  %v227 = vrsqrt.pop %v226
  %v228 = vmul.f32 %v225, %v227
  %v229 = vlaneseq
  %v230 = vshrl.u32 %v229, 7
  %v231 = vsub.s32 0, %v230
  %v232 = vrot.slane %v57, %v231
  %v233 = vmul.f32 %v228, %v232
  %v234 = vlaneseq
  %v235 = vshrl.u32 %v234, 7
  %v236 = vsub.s32 0, %v235
  %v237 = vrot.slane %v58, %v236
  %v238 = vadd.f32 %v233, %v237
  %v239 = vmax.f32 %v238, 0.0
  %v241 = vsel %vm61, %v239, 0
  %243 = vmatprep.subr.mxu0 0.0
  %244 = vmatpush1.msra.mxu0 0.0
  %245 = vmatprep.subr.mxu0 0.0
  %246 = vmatpush1.msra.mxu0 0.0
  %247 = vmatprep.subr.mxu0 0.0
  %248 = vmatpush1.msra.mxu0 0.0
  %249 = vmatprep.subr.mxu0 0.0
  %250 = vmatpush1.msra.mxu0 0.0
  %251 = vmatprep.subr.mxu0 0.0
  %252 = vmatpush1.msra.mxu0 0.0
  %253 = vmatprep.subr.mxu0 0.0
  %254 = vmatpush1.msra.mxu0 0.0
  %255 = vmatprep.subr.mxu0 0.0
  %256 = vmatpush1.msra.mxu0 0.0
  %257 = vmatprep.subr.mxu0 0.0
  %258 = vmatpush1.msra.mxu0 0.0
  %259 = vmatprep.subr.mxu0 0.0
  %260 = vmatpush1.msra.mxu0 0.0
  %261 = vmatprep.subr.mxu0 0.0
  %262 = vmatpush1.msra.mxu0 0.0
  %263 = vmatprep.subr.mxu0 0.0
  %264 = vmatpush1.msra.mxu0 0.0
  %265 = vmatprep.subr.mxu0 0.0
  %266 = vmatpush1.msra.mxu0 0.0
  %267 = vmatprep.subr.mxu0 0.0
  %268 = vmatpush1.msra.mxu0 %v56
  %269 = vmatprep.subr.mxu0 0.0
  %270 = vmatpush1.msra.mxu0 %v55
  %271 = vmatprep.subr.mxu0 0.0
  %272 = vmatpush1.msra.mxu0 %v54
  %273 = vmatprep.subr.mxu0 0.0
  %274 = vmatpush1.msra.mxu0 %v53
  %275 = vmatprep.subr.mxu0 0.0
  %276 = vmatpush2.msra.mxu0 0.0
  %277 = vmatprep.subr.mxu0 0.0
  %278 = vmatpush2.msra.mxu0 0.0
  %279 = vmatprep.subr.mxu0 0.0
  %280 = vmatpush2.msra.mxu0 0.0
  %281 = vmatprep.subr.mxu0 0.0
  %282 = vmatpush2.msra.mxu0 0.0
  %283 = vmatprep.subr.mxu0 0.0
  %284 = vmatpush2.msra.mxu0 0.0
  %285 = vmatprep.subr.mxu0 0.0
  %286 = vmatpush2.msra.mxu0 0.0
  %287 = vmatprep.subr.mxu0 0.0
  %288 = vmatpush2.msra.mxu0 0.0
  %289 = vmatprep.subr.mxu0 0.0
  %290 = vmatpush2.msra.mxu0 0.0
  %291 = vmatprep.subr.mxu0 0.0
  %292 = vmatpush2.msra.mxu0 0.0
  %293 = vmatprep.subr.mxu0 0.0
  %294 = vmatpush2.msra.mxu0 0.0
  %295 = vmatprep.subr.mxu0 0.0
  %296 = vmatpush2.msra.mxu0 0.0
  %297 = vmatprep.subr.mxu0 0.0
  %298 = vmatpush2.msra.mxu0 0.0
  %299 = vmatprep.subr.mxu0 0.0
  %300 = vmatpush2.msra.mxu0 0.0
  %301 = vmatprep.subr.mxu0 0.0
  %302 = vmatpush2.msra.mxu0 0.0
  %303 = vmatprep.subr.mxu0 0.0
  %304 = vmatpush2.msra.mxu0 0.0
  %305 = vmatprep.subr.mxu0 0.0
  %306 = vmatpush2.msra.mxu0 0.0
  %307 = vmatprep.mubr.f32.mxu0 0.0
  %308 = vmatmul.mubr.f32.gmra.mxu0 %v241
  %v309 = vpop.f32.mrf.mxu0
  %v310 = vadd.f32 0.0, %v309
  %v311 = vpop.f32.mrf.mxu0
  %312 = vdwg.mxu0
  %v313 = vsel %vm61, %v310, 0.0
  %v314 = vrot.slane %v313, 4
  %v315 = vadd.f32 %v313, %v314
  %v316 = vrot.slane %v315, 2
  %v317 = vadd.f32 %v315, %v316
  %v318 = vrot.slane %v317, 1
  %v319 = vadd.f32 %v317, %v318
  %v320 = vmul.f32 %v319, 0.125
  %v321 = vmul.f32 %v310, %v310
  %v322 = vsel %vm61, %v321, 0.0
  %v323 = vrot.slane %v322, 4
  %v324 = vadd.f32 %v322, %v323
  %v325 = vrot.slane %v324, 2
  %v326 = vadd.f32 %v324, %v325
  %v327 = vrot.slane %v326, 1
  %v328 = vadd.f32 %v326, %v327
  %v329 = vmul.f32 %v328, 0.125
  %v330 = vmul.f32 %v320, %v320
  %v331 = vsub.f32 %v329, %v330
  %v332 = vmax.f32 %v331, 0.0
  %v333 = vsub.f32 %v310, %v320
  %v334 = vadd.f32 %v332, 1e-05
  %v335 = vrsqrt.pop %v334
  %v336 = vmul.f32 %v333, %v335
  %v337 = vlaneseq
  %v338 = vshrl.u32 %v337, 7
  %v339 = vsub.s32 0, %v338
  %v340 = vrot.slane %v59, %v339
  %v341 = vmul.f32 %v336, %v340
  %v342 = vlaneseq
  %v343 = vshrl.u32 %v342, 7
  %v344 = vsub.s32 0, %v343
  %v345 = vrot.slane %v60, %v344
  %v346 = vadd.f32 %v341, %v345
  %v347 = vmax.f32 %v346, 0.0
  %v348 = vld [vmem:[%s2] sm:$0xff]
  %v349 = vld [vmem:[%s2 + $0x8] sm:$0xff]
  %v350 = vld [vmem:[%s2 + $0x10] sm:$0xff]
  %v351 = vld [vmem:[%s2 + $0x18] sm:$0xff]
  %v352 = vld [vmem:[%s2 + $0x20] sm:$0xff]
  %v353 = vld [vmem:[%s2 + $0x28] sm:$0xff]
  %v354 = vld [vmem:[%s2 + $0x30] sm:$0xff]
  %v355 = vld [vmem:[%s2 + $0x38] sm:$0xff]
  %v356 = vld [vmem:[%s2 + $0x40] sm:$0xff]
  %v357 = vld [vmem:[%s2 + $0x48] sm:$0xff]
  %v358 = vld [vmem:[%s2 + $0x50] sm:$0xff]
  %v359 = vld [vmem:[%s2 + $0x58] sm:$0xff]
  %v361 = vsel %vm61, %v347, 0
  %363 = vmatprep.subr.mxu0 0.0
  %364 = vmatpush1.msra.mxu0 0.0
  %365 = vmatprep.subr.mxu0 0.0
  %366 = vmatpush1.msra.mxu0 0.0
  %367 = vmatprep.subr.mxu0 0.0
  %368 = vmatpush1.msra.mxu0 0.0
  %369 = vmatprep.subr.mxu0 0.0
  %370 = vmatpush1.msra.mxu0 0.0
  %371 = vmatprep.subr.mxu0 0.0
  %372 = vmatpush1.msra.mxu0 0.0
  %373 = vmatprep.subr.mxu0 0.0
  %374 = vmatpush1.msra.mxu0 0.0
  %375 = vmatprep.subr.mxu0 0.0
  %376 = vmatpush1.msra.mxu0 0.0
  %377 = vmatprep.subr.mxu0 0.0
  %378 = vmatpush1.msra.mxu0 0.0
  %379 = vmatprep.subr.mxu0 0.0
  %380 = vmatpush1.msra.mxu0 0.0
  %381 = vmatprep.subr.mxu0 0.0
  %382 = vmatpush1.msra.mxu0 0.0
  %383 = vmatprep.subr.mxu0 0.0
  %384 = vmatpush1.msra.mxu0 0.0
  %385 = vmatprep.subr.mxu0 0.0
  %386 = vmatpush1.msra.mxu0 0.0
  %387 = vmatprep.subr.mxu0 %v358
  %388 = vmatpush1.msra.mxu0 %v357
  %389 = vmatprep.subr.mxu0 %v355
  %390 = vmatpush1.msra.mxu0 %v354
  %391 = vmatprep.subr.mxu0 %v352
  %392 = vmatpush1.msra.mxu0 %v351
  %393 = vmatprep.subr.mxu0 %v349
  %394 = vmatpush1.msra.mxu0 %v348
  %395 = vmatprep.subr.mxu0 0.0
  %396 = vmatpush2.msra.mxu0 0.0
  %397 = vmatprep.subr.mxu0 0.0
  %398 = vmatpush2.msra.mxu0 0.0
  %399 = vmatprep.subr.mxu0 0.0
  %400 = vmatpush2.msra.mxu0 0.0
  %401 = vmatprep.subr.mxu0 0.0
  %402 = vmatpush2.msra.mxu0 0.0
  %403 = vmatprep.subr.mxu0 0.0
  %404 = vmatpush2.msra.mxu0 0.0
  %405 = vmatprep.subr.mxu0 0.0
  %406 = vmatpush2.msra.mxu0 0.0
  %407 = vmatprep.subr.mxu0 0.0
  %408 = vmatpush2.msra.mxu0 0.0
  %409 = vmatprep.subr.mxu0 0.0
  %410 = vmatpush2.msra.mxu0 0.0
  %411 = vmatprep.subr.mxu0 0.0
  %412 = vmatpush2.msra.mxu0 0.0
  %413 = vmatprep.subr.mxu0 0.0
  %414 = vmatpush2.msra.mxu0 0.0
  %415 = vmatprep.subr.mxu0 0.0
  %416 = vmatpush2.msra.mxu0 0.0
  %417 = vmatprep.subr.mxu0 0.0
  %418 = vmatpush2.msra.mxu0 0.0
  %419 = vmatprep.subr.mxu0 0.0
  %420 = vmatpush2.msra.mxu0 0.0
  %421 = vmatprep.subr.mxu0 0.0
  %422 = vmatpush2.msra.mxu0 0.0
  %423 = vmatprep.subr.mxu0 0.0
  %424 = vmatpush2.msra.mxu0 0.0
  %425 = vmatprep.subr.mxu0 0.0
  %426 = vmatpush2.msra.mxu0 0.0
  %427 = vmatprep.mubr.f32.mxu0 0.0
  %428 = vmatmul.mubr.f32.gmra.mxu0 %v361
  %v429 = vpop.f32.mrf.mxu0
  %v430 = vadd.f32 %v14, %v429
  %v431 = vpop.f32.mrf.mxu0
  %v432 = vadd.f32 %v15, %v431
  %433 = vdwg.mxu0
  %434 = vmatprep.subr.mxu0 0.0
  %435 = vmatpush1.msra.mxu0 0.0
  %436 = vmatprep.subr.mxu0 0.0
  %437 = vmatpush1.msra.mxu0 0.0
  %438 = vmatprep.subr.mxu0 0.0
  %439 = vmatpush1.msra.mxu0 0.0
  %440 = vmatprep.subr.mxu0 0.0
  %441 = vmatpush1.msra.mxu0 0.0
  %442 = vmatprep.subr.mxu0 0.0
  %443 = vmatpush1.msra.mxu0 0.0
  %444 = vmatprep.subr.mxu0 0.0
  %445 = vmatpush1.msra.mxu0 0.0
  %446 = vmatprep.subr.mxu0 0.0
  %447 = vmatpush1.msra.mxu0 0.0
  %448 = vmatprep.subr.mxu0 0.0
  %449 = vmatpush1.msra.mxu0 0.0
  %450 = vmatprep.subr.mxu0 0.0
  %451 = vmatpush1.msra.mxu0 0.0
  %452 = vmatprep.subr.mxu0 0.0
  %453 = vmatpush1.msra.mxu0 0.0
  %454 = vmatprep.subr.mxu0 0.0
  %455 = vmatpush1.msra.mxu0 0.0
  %456 = vmatprep.subr.mxu0 0.0
  %457 = vmatpush1.msra.mxu0 0.0
  %458 = vmatprep.subr.mxu0 0.0
  %459 = vmatpush1.msra.mxu0 %v359
  %460 = vmatprep.subr.mxu0 0.0
  %461 = vmatpush1.msra.mxu0 %v356
  %462 = vmatprep.subr.mxu0 0.0
  %463 = vmatpush1.msra.mxu0 %v353
  %464 = vmatprep.subr.mxu0 0.0
  %465 = vmatpush1.msra.mxu0 %v350
  %466 = vmatprep.subr.mxu0 0.0
  %467 = vmatpush2.msra.mxu0 0.0
  %468 = vmatprep.subr.mxu0 0.0
  %469 = vmatpush2.msra.mxu0 0.0
  %470 = vmatprep.subr.mxu0 0.0
  %471 = vmatpush2.msra.mxu0 0.0
  %472 = vmatprep.subr.mxu0 0.0
  %473 = vmatpush2.msra.mxu0 0.0
  %474 = vmatprep.subr.mxu0 0.0
  %475 = vmatpush2.msra.mxu0 0.0
  %476 = vmatprep.subr.mxu0 0.0
  %477 = vmatpush2.msra.mxu0 0.0
  %478 = vmatprep.subr.mxu0 0.0
  %479 = vmatpush2.msra.mxu0 0.0
  %480 = vmatprep.subr.mxu0 0.0
  %481 = vmatpush2.msra.mxu0 0.0
  %482 = vmatprep.subr.mxu0 0.0
  %483 = vmatpush2.msra.mxu0 0.0
  %484 = vmatprep.subr.mxu0 0.0
  %485 = vmatpush2.msra.mxu0 0.0
  %486 = vmatprep.subr.mxu0 0.0
  %487 = vmatpush2.msra.mxu0 0.0
  %488 = vmatprep.subr.mxu0 0.0
  %489 = vmatpush2.msra.mxu0 0.0
  %490 = vmatprep.subr.mxu0 0.0
  %491 = vmatpush2.msra.mxu0 0.0
  %492 = vmatprep.subr.mxu0 0.0
  %493 = vmatpush2.msra.mxu0 0.0
  %494 = vmatprep.subr.mxu0 0.0
  %495 = vmatpush2.msra.mxu0 0.0
  %496 = vmatprep.subr.mxu0 0.0
  %497 = vmatpush2.msra.mxu0 0.0
  %498 = vmatprep.mubr.f32.mxu0 0.0
  %499 = vmatmul.mubr.f32.gmra.mxu0 %v361
  %v500 = vpop.f32.mrf.mxu0
  %v501 = vadd.f32 %v16, %v500
  %v502 = vpop.f32.mrf.mxu0
  %503 = vdwg.mxu0
  %v504 = vmax.f32 %v430, 0.0
  %v505 = vmax.f32 %v432, 0.0
  %v506 = vmax.f32 %v501, 0.0
  %507 = vst [vmem:[%s3] sm:$0xff] %v504
  %508 = vst [vmem:[%s3 + $0x8] sm:$0xff] %v505
  %509 = vst.msk [vmem:[%s3 + $0x10] sm:$0xff] %vm61, %v506
  // Predicated region
  $region14: #{basic_block_forward.1} parent=0 // pred_check
    _
  $region15: #{basic_block_forward.1} parent=0 // pred_check_branch
    %511 = sbr.rel (0) target = $region17
  $region16: #{basic_block_forward.1} parent=0 // pred_region
    _
  $region17: #{basic_block_forward.1} parent=0 // pred_fallthru
    _
  // Predicated region
  $region18: #{basic_block_forward.1} parent=0 // pred_check
    _
  $region19: #{basic_block_forward.1} parent=0 // pred_check_branch
    %513 = sbr.rel (0) target = $region21
  $region20: #{basic_block_forward.1} parent=0 // pred_region
    _
  $region21: #{basic_block_forward.1} parent=0 // pred_fallthru
    _

</llo_original>
